<compile_context>
chip_gen: v7x
topology: tpu7x:2x2x1
jax: 0.10.0
libtpu: 0.0.40
codegen_flags: <defaults>
</compile_context>

<pallas_src>
import math

import jax
import jax.numpy as jnp
from jax.experimental import pallas as pl
from jax.experimental.pallas import tpu as pltpu


def _shift_rows(a, r):
    """s[h, :] = a[h + r, :] for 0 <= h + r < H, else 0 (zero padding along H).

    Implemented with a static sublane slice + concat with a zero row (tiny, ~8 KB copies);
    could also be a pltpu.roll along sublanes + edge mask (XLU), but the copies are
    negligible at this tile size and the slice form is layout-exact.
    """
    if r == 0:
        return a
    H, WC = a.shape
    zeros = jnp.zeros((abs(r), WC), a.dtype)
    if r > 0:
        return jnp.concatenate([a[r:H, :], zeros], axis=0)
    return jnp.concatenate([zeros, a[0:H + r, :]], axis=0)


def basic_block_kernel(x_ref, m1_ref, b1_ref, m2_ref, b2_ref, o_ref):
    # x_ref : (1, H, W*Cin)      activations, lane-dense (last dim = W*C)
    # m1_ref: (3, W*Cin, W*Cmid) W-lowered conv1 weights (banded block-Toeplitz over W)
    # b1_ref: (1, W*Cmid) f32    conv1 bias tiled across W
    # m2_ref: (3, W*Cmid, W*Cout)
    # b2_ref: (1, W*Cout) f32
    # o_ref : (1, H, W*Cout)
    H = x_ref.shape[1]
    mxu_dtype = m1_ref.dtype

    # Single upcast; this same value is the residual (no second HBM stream of x).
    x2d = x_ref[0].astype(jnp.float32)                       # (H, W*Cin)

    def conv3x3(a_f32, m_ref, b_ref):
        # Bias folded into the accumulator init (broadcast hoisted out of the tap loop).
        acc = jnp.broadcast_to(b_ref[...], (H, m_ref.shape[2])).astype(jnp.float32)
        # dy taps: 3 lane-dense matmuls with K = W*Cin (the dx taps + W padding are
        # already folded into m_ref), accumulated in f32.
        for r in (-1, 0, 1):
            lhs = _shift_rows(a_f32, r).astype(mxu_dtype)
            acc = acc + jnp.dot(lhs, m_ref[r + 1],
                                preferred_element_type=jnp.float32)
        return acc

    h1 = jnp.maximum(conv3x3(x2d, m1_ref, b1_ref), 0.0)      # conv1 + b1, ReLU (f32)
    h2 = conv3x3(h1, m2_ref, b2_ref)                         # conv2 + b2
    out = jnp.maximum(h2 + x2d, 0.0)                         # residual add + ReLU (f32)
    o_ref[...] = out[None].astype(o_ref.dtype)


def _lower_conv3x3_weights(w, W):
    """HWIO (3,3,Cin,Cout) -> (3, W*Cin, W*Cout) banded block-Toeplitz over the W axis.

    M[dy, w_in*Cin+ci, w_out*Cout+co] = w[dy, w_in-w_out+1, ci, co] if |w_in-w_out|<=1 else 0.
    This folds the 3 dx taps AND the W-direction zero padding into the MXU contraction.
    """
    kh, kw, Cin, Cout = w.shape
    dx = jnp.arange(kw)
    w_in = jnp.arange(W)
    w_out = jnp.arange(W)
    band = (w_in[None, :, None] == (w_out[None, None, :] + dx[:, None, None] - 1)
            ).astype(w.dtype)                                 # (3, W, W)
    m = jnp.einsum('xab,yxio->yaibo', band, w)                # (dy, w_in, ci, w_out, co)
    return m.reshape(kh, W * Cin, W * Cout)


def basic_block(x_nchw, w1, b1, w2, b2, *, mxu_dtype=jnp.float32):
    """x_nchw: (N, C, H, W) float32 (PyTorch convention). Returns NCHW float32.

    mxu_dtype=jnp.bfloat16 casts the HBM-facing activations/weights and the MXU operands
    to bf16 (v6e/v7x fast path); accumulation and all elementwise math stay f32.
    """
    N, Cin, H, W = x_nchw.shape
    Cmid, Cout = w1.shape[3], w2.shape[3]
    assert w1.shape[:3] == (3, 3, Cin) and w2.shape[:3] == (3, 3, Cmid)
    assert Cin == Cmid == Cout, (
        "residual add with stride=1 / downsample=None requires in_planes == planes")

    # NHWC, then fold W into the lane axis: last dim = W*C (=128 for the test shape).
    x2d = jnp.transpose(x_nchw, (0, 2, 3, 1)).reshape(N, H, W * Cin)

    m1 = _lower_conv3x3_weights(w1, W).astype(mxu_dtype)      # (3, W*Cin, W*Cmid)
    m2 = _lower_conv3x3_weights(w2, W).astype(mxu_dtype)      # (3, W*Cmid, W*Cout)
    b1r = jnp.tile(b1, W).reshape(1, W * Cmid).astype(jnp.float32)
    b2r = jnp.tile(b2, W).reshape(1, W * Cout).astype(jnp.float32)

    out2d = pl.pallas_call(
        basic_block_kernel,
        out_shape=jax.ShapeDtypeStruct((N, H, W * Cout), x_nchw.dtype),
        grid_spec=pltpu.PrefetchScalarGridSpec(
            num_scalar_prefetch=0,
            grid=(N,),
            in_specs=[
                pl.BlockSpec((1, H, W * Cin), lambda n: (n, 0, 0)),
                pl.BlockSpec((3, W * Cin, W * Cmid), lambda n: (0, 0, 0)),
                pl.BlockSpec((1, W * Cmid), lambda n: (0, 0)),
                pl.BlockSpec((3, W * Cmid, W * Cout), lambda n: (0, 0, 0)),
                pl.BlockSpec((1, W * Cout), lambda n: (0, 0)),
            ],
            out_specs=pl.BlockSpec((1, H, W * Cout), lambda n: (n, 0, 0)),
        ),
        compiler_params=pltpu.CompilerParams(
            dimension_semantics=("parallel",),        # no cross-step state -> megacore-safe
            vmem_limit_bytes=32 * 1024 * 1024),       # explicit budget (v7x has 64 MiB VMEM)
    )(x2d.astype(mxu_dtype), m1, b1r, m2, b2r)

    return jnp.transpose(out2d.reshape(N, H, W, Cout), (0, 3, 1, 2))


def basic_block_ref(x_nchw, w1, b1, w2, b2):
    """Plain-JAX f32 reference (matches the PyTorch forward: BN layers are unused)."""
    x = jnp.transpose(x_nchw, (0, 2, 3, 1))

    def conv(h, w, b):
        y = jax.lax.conv_general_dilated(
            h, w, window_strides=(1, 1), padding=((1, 1), (1, 1)),
            dimension_numbers=('NHWC', 'HWIO', 'NHWC'))
        return y + b

    out = jax.nn.relu(conv(x, w1, b1))
    out = conv(out, w2, b2)
    out = jax.nn.relu(out + x)
    return jnp.transpose(out, (0, 3, 1, 2))


if __name__ == "__main__":
    # Small shapes: batch=2, in_planes=planes=8, spatial=16x16 -> W*C = 128 (lane-dense).
    N, C, H, W = 2, 8, 16, 16
    key = jax.random.PRNGKey(0)
    kx, k1, k2, k3, k4 = jax.random.split(key, 5)

    x = jax.random.normal(kx, (N, C, H, W), dtype=jnp.float32)

    fan_in = 3 * 3 * C
    std = 1.0 / math.sqrt(fan_in)
    w1 = jax.random.normal(k1, (3, 3, C, C), dtype=jnp.float32) * std
    b1 = jax.random.normal(k2, (C,), dtype=jnp.float32) * std
    w2 = jax.random.normal(k3, (3, 3, C, C), dtype=jnp.float32) * std
    b2 = jax.random.normal(k4, (C,), dtype=jnp.float32) * std

    ref = jax.block_until_ready(basic_block_ref(x, w1, b1, w2, b2))

    # f32 MXU path: faithful to the module's f32 forward.
    out = jax.block_until_ready(basic_block(x, w1, b1, w2, b2))
    assert out.shape == (N, C, H, W), out.shape
    assert jnp.allclose(out, ref, atol=1e-4, rtol=1e-4), (
        float(jnp.max(jnp.abs(out - ref))))

    # bf16 MXU path (v6e/v7x): f32 accumulate + f32 elementwise; loose tolerance.
    out_bf16 = jax.block_until_ready(
        basic_block(x, w1, b1, w2, b2, mxu_dtype=jnp.bfloat16))
    assert jnp.allclose(out_bf16, ref, atol=7e-2, rtol=7e-2), (
        float(jnp.max(jnp.abs(out_bf16 - ref))))

    print("KERNEL_OK")
</pallas_src>

<mosaic_0001>
module attributes {stable_mosaic.version = 11 : i64} {
  func.func @basic_block_kernel(%arg0: i32, %arg1: memref<1x16x128xf32, #tpu.memory_space<vmem>>, %arg2: memref<3x128x128xf32, #tpu.memory_space<vmem>>, %arg3: memref<1x128xf32, #tpu.memory_space<vmem>>, %arg4: memref<3x128x128xf32, #tpu.memory_space<vmem>>, %arg5: memref<1x128xf32, #tpu.memory_space<vmem>>, %arg6: memref<1x16x128xf32, #tpu.memory_space<vmem>>) attributes {dimension_semantics = [#tpu.dimension_semantics<parallel>], iteration_bounds = array<i64: 2>, scalar_prefetch = 0 : i64, scratch_operands = 0 : i64, tpu.core_type = #tpu.core_type<tc>, window_params = [{transform_indices = @transform_0, window_bounds = array<i64: 1, 16, 128>}, {pipeline_mode = #tpu.pipeline_mode<synchronous>, transform_indices = @transform_1, window_bounds = array<i64: 3, 128, 128>}, {pipeline_mode = #tpu.pipeline_mode<synchronous>, transform_indices = @transform_2, window_bounds = array<i64: 1, 128>}, {pipeline_mode = #tpu.pipeline_mode<synchronous>, transform_indices = @transform_3, window_bounds = array<i64: 3, 128, 128>}, {pipeline_mode = #tpu.pipeline_mode<synchronous>, transform_indices = @transform_4, window_bounds = array<i64: 1, 128>}, {transform_indices = @transform_5, window_bounds = array<i64: 1, 16, 128>}]} {
    %c0 = arith.constant 0 : index
    %c0_0 = arith.constant 0 : index
    %c0_1 = arith.constant 0 : index
    %0 = vector.load %arg1[%c0, %c0_0, %c0_1] : memref<1x16x128xf32, #tpu.memory_space<vmem>>, vector<1x16x128xf32>
    %1 = vector.shape_cast %0 : vector<1x16x128xf32> to vector<16x128xf32>
    %c0_2 = arith.constant 0 : index
    %c0_3 = arith.constant 0 : index
    %2 = vector.load %arg3[%c0_2, %c0_3] : memref<1x128xf32, #tpu.memory_space<vmem>>, vector<1x128xf32>
    %3 = vector.shape_cast %2 : vector<1x128xf32> to vector<1x128xf32>
    %4 = vector.broadcast %3 : vector<1x128xf32> to vector<16x128xf32>
    %cst = arith.constant 0.000000e+00 : f32
    %5 = vector.broadcast %cst : f32 to vector<1x128xf32>
    %6 = vector.extract_strided_slice %1 {offsets = [0, 0], sizes = [15, 128], strides = [1, 1]} : vector<16x128xf32> to vector<15x128xf32>
    %7 = tpu.concatenate %5, %6 in 0 : vector<1x128xf32>, vector<15x128xf32> -> vector<16x128xf32>
    %c0_4 = arith.constant 0 : index
    %c0_5 = arith.constant 0 : index
    %c0_6 = arith.constant 0 : index
    %8 = vector.load %arg2[%c0_4, %c0_5, %c0_6] : memref<3x128x128xf32, #tpu.memory_space<vmem>>, vector<1x128x128xf32>
    %9 = vector.shape_cast %8 : vector<1x128x128xf32> to vector<128x128xf32>
    %cst_7 = arith.constant dense<0.000000e+00> : vector<16x128xf32>
    %10 = tpu.matmul %7, %9, %cst_7 {dimension_numbers = #tpu.dot_dimension_numbers<[1], [0], [0], [1], [0, 0, 1, 1], [], []>} : vector<16x128xf32>, vector<128x128xf32>, vector<16x128xf32> -> vector<16x128xf32>
    %11 = arith.addf %4, %10 : vector<16x128xf32>
    %c1 = arith.constant 1 : index
    %c0_8 = arith.constant 0 : index
    %c0_9 = arith.constant 0 : index
    %12 = vector.load %arg2[%c1, %c0_8, %c0_9] : memref<3x128x128xf32, #tpu.memory_space<vmem>>, vector<1x128x128xf32>
    %13 = vector.shape_cast %12 : vector<1x128x128xf32> to vector<128x128xf32>
    %cst_10 = arith.constant dense<0.000000e+00> : vector<16x128xf32>
    %14 = tpu.matmul %1, %13, %cst_10 {dimension_numbers = #tpu.dot_dimension_numbers<[1], [0], [0], [1], [0, 0, 1, 1], [], []>} : vector<16x128xf32>, vector<128x128xf32>, vector<16x128xf32> -> vector<16x128xf32>
    %15 = arith.addf %11, %14 : vector<16x128xf32>
    %cst_11 = arith.constant 0.000000e+00 : f32
    %16 = vector.broadcast %cst_11 : f32 to vector<1x128xf32>
    %17 = vector.extract_strided_slice %1 {offsets = [1, 0], sizes = [15, 128], strides = [1, 1]} : vector<16x128xf32> to vector<15x128xf32>
    %18 = tpu.concatenate %17, %16 in 0 : vector<15x128xf32>, vector<1x128xf32> -> vector<16x128xf32>
    %c2 = arith.constant 2 : index
    %c0_12 = arith.constant 0 : index
    %c0_13 = arith.constant 0 : index
    %19 = vector.load %arg2[%c2, %c0_12, %c0_13] : memref<3x128x128xf32, #tpu.memory_space<vmem>>, vector<1x128x128xf32>
    %20 = vector.shape_cast %19 : vector<1x128x128xf32> to vector<128x128xf32>
    %cst_14 = arith.constant dense<0.000000e+00> : vector<16x128xf32>
    %21 = tpu.matmul %18, %20, %cst_14 {dimension_numbers = #tpu.dot_dimension_numbers<[1], [0], [0], [1], [0, 0, 1, 1], [], []>} : vector<16x128xf32>, vector<128x128xf32>, vector<16x128xf32> -> vector<16x128xf32>
    %22 = arith.addf %15, %21 : vector<16x128xf32>
    %cst_15 = arith.constant 0.000000e+00 : f32
    %23 = vector.broadcast %cst_15 : f32 to vector<16x128xf32>
    %24 = arith.maximumf %22, %23 : vector<16x128xf32>
    %c0_16 = arith.constant 0 : index
    %c0_17 = arith.constant 0 : index
    %25 = vector.load %arg5[%c0_16, %c0_17] : memref<1x128xf32, #tpu.memory_space<vmem>>, vector<1x128xf32>
    %26 = vector.shape_cast %25 : vector<1x128xf32> to vector<1x128xf32>
    %27 = vector.broadcast %26 : vector<1x128xf32> to vector<16x128xf32>
    %cst_18 = arith.constant 0.000000e+00 : f32
    %28 = vector.broadcast %cst_18 : f32 to vector<1x128xf32>
    %29 = vector.extract_strided_slice %24 {offsets = [0, 0], sizes = [15, 128], strides = [1, 1]} : vector<16x128xf32> to vector<15x128xf32>
    %30 = tpu.concatenate %28, %29 in 0 : vector<1x128xf32>, vector<15x128xf32> -> vector<16x128xf32>
    %c0_19 = arith.constant 0 : index
    %c0_20 = arith.constant 0 : index
    %c0_21 = arith.constant 0 : index
    %31 = vector.load %arg4[%c0_19, %c0_20, %c0_21] : memref<3x128x128xf32, #tpu.memory_space<vmem>>, vector<1x128x128xf32>
    %32 = vector.shape_cast %31 : vector<1x128x128xf32> to vector<128x128xf32>
    %cst_22 = arith.constant dense<0.000000e+00> : vector<16x128xf32>
    %33 = tpu.matmul %30, %32, %cst_22 {dimension_numbers = #tpu.dot_dimension_numbers<[1], [0], [0], [1], [0, 0, 1, 1], [], []>} : vector<16x128xf32>, vector<128x128xf32>, vector<16x128xf32> -> vector<16x128xf32>
    %34 = arith.addf %27, %33 : vector<16x128xf32>
    %c1_23 = arith.constant 1 : index
    %c0_24 = arith.constant 0 : index
    %c0_25 = arith.constant 0 : index
    %35 = vector.load %arg4[%c1_23, %c0_24, %c0_25] : memref<3x128x128xf32, #tpu.memory_space<vmem>>, vector<1x128x128xf32>
    %36 = vector.shape_cast %35 : vector<1x128x128xf32> to vector<128x128xf32>
    %cst_26 = arith.constant dense<0.000000e+00> : vector<16x128xf32>
    %37 = tpu.matmul %24, %36, %cst_26 {dimension_numbers = #tpu.dot_dimension_numbers<[1], [0], [0], [1], [0, 0, 1, 1], [], []>} : vector<16x128xf32>, vector<128x128xf32>, vector<16x128xf32> -> vector<16x128xf32>
    %38 = arith.addf %34, %37 : vector<16x128xf32>
    %cst_27 = arith.constant 0.000000e+00 : f32
    %39 = vector.broadcast %cst_27 : f32 to vector<1x128xf32>
    %40 = vector.extract_strided_slice %24 {offsets = [1, 0], sizes = [15, 128], strides = [1, 1]} : vector<16x128xf32> to vector<15x128xf32>
    %41 = tpu.concatenate %40, %39 in 0 : vector<15x128xf32>, vector<1x128xf32> -> vector<16x128xf32>
    %c2_28 = arith.constant 2 : index
    %c0_29 = arith.constant 0 : index
    %c0_30 = arith.constant 0 : index
    %42 = vector.load %arg4[%c2_28, %c0_29, %c0_30] : memref<3x128x128xf32, #tpu.memory_space<vmem>>, vector<1x128x128xf32>
    %43 = vector.shape_cast %42 : vector<1x128x128xf32> to vector<128x128xf32>
    %cst_31 = arith.constant dense<0.000000e+00> : vector<16x128xf32>
    %44 = tpu.matmul %41, %43, %cst_31 {dimension_numbers = #tpu.dot_dimension_numbers<[1], [0], [0], [1], [0, 0, 1, 1], [], []>} : vector<16x128xf32>, vector<128x128xf32>, vector<16x128xf32> -> vector<16x128xf32>
    %45 = arith.addf %38, %44 : vector<16x128xf32>
    %46 = arith.addf %45, %1 : vector<16x128xf32>
    %cst_32 = arith.constant 0.000000e+00 : f32
    %47 = vector.broadcast %cst_32 : f32 to vector<16x128xf32>
    %48 = arith.maximumf %46, %47 : vector<16x128xf32>
    %49 = vector.shape_cast %48 : vector<16x128xf32> to vector<1x16x128xf32>
    %c0_33 = arith.constant 0 : index
    %c0_34 = arith.constant 0 : index
    %c0_35 = arith.constant 0 : index
    %50 = vector.load %arg6[%c0_33, %c0_34, %c0_35] : memref<1x16x128xf32, #tpu.memory_space<vmem>>, vector<1x16x128xf32>
    tpu.vector_store %arg6[%c0_33, %c0_34, %c0_35], %49 {strides = array<i32>} : memref<1x16x128xf32, #tpu.memory_space<vmem>>, vector<1x16x128xf32>,
    return
  }
  func.func @transform_0(%arg0: i32) -> (i32, i32, i32) {
    %c0_i32 = arith.constant 0 : i32
    %c0_i32_0 = arith.constant 0 : i32
    %c0_i32_1 = arith.constant 0 : i32
    return %arg0, %c0_i32, %c0_i32_0 : i32, i32, i32
  }
  func.func @transform_1(%arg0: i32) -> (i32, i32, i32) {
    %c0_i32 = arith.constant 0 : i32
    %c0_i32_0 = arith.constant 0 : i32
    %c0_i32_1 = arith.constant 0 : i32
    %c0_i32_2 = arith.constant 0 : i32
    return %c0_i32, %c0_i32_0, %c0_i32_1 : i32, i32, i32
  }
  func.func @transform_2(%arg0: i32) -> (i32, i32) {
    %c0_i32 = arith.constant 0 : i32
    %c0_i32_0 = arith.constant 0 : i32
    %c0_i32_1 = arith.constant 0 : i32
    return %c0_i32, %c0_i32_0 : i32, i32
  }
  func.func @transform_3(%arg0: i32) -> (i32, i32, i32) {
    %c0_i32 = arith.constant 0 : i32
    %c0_i32_0 = arith.constant 0 : i32
    %c0_i32_1 = arith.constant 0 : i32
    %c0_i32_2 = arith.constant 0 : i32
    return %c0_i32, %c0_i32_0, %c0_i32_1 : i32, i32, i32
  }
  func.func @transform_4(%arg0: i32) -> (i32, i32) {
    %c0_i32 = arith.constant 0 : i32
    %c0_i32_0 = arith.constant 0 : i32
    %c0_i32_1 = arith.constant 0 : i32
    return %c0_i32, %c0_i32_0 : i32, i32
  }
  func.func @transform_5(%arg0: i32) -> (i32, i32, i32) {
    %c0_i32 = arith.constant 0 : i32
    %c0_i32_0 = arith.constant 0 : i32
    %c0_i32_1 = arith.constant 0 : i32
    return %arg0, %c0_i32, %c0_i32_0 : i32, i32, i32
  }
}

</mosaic_0001>

<llo_original>
// kernel: tpu_custom_call.1
$region0: #{tpu_custom_call.1}
  #allocation0 [shape = 'u32[]', space=smem, size = 0x4, offset = 0x4, fixed_abs, tag = 'smem constant byte address 0x4 - core index']
  #allocation1 [shape = 'u32[144,128]{1,0:T(1,128)}', space=vmem, size = 0x12000, scoped, tag = 'internal scratch']
  %s0 = inlined_call_operand.hbm [shape: f32[2,16,128], index: 0, kind: input, shape index: {}]
  %s1 = inlined_call_operand.hbm [shape: f32[3,128,128], index: 1, kind: input, shape index: {}]
  %s2 = inlined_call_operand.vmem [shape: f32[1,128], index: 2, kind: input, shape index: {}]
  %s3 = inlined_call_operand.hbm [shape: f32[3,128,128], index: 3, kind: input, shape index: {}]
  %s4 = inlined_call_operand.vmem [shape: f32[1,128], index: 4, kind: input, shape index: {}]
  %s5 = inlined_call_operand.hbm [shape: f32[2,16,128], index: 5, kind: output, shape index: {}]
  %s6 = sld [smem:[#allocation0]]
  $region65: #{tpu_custom_call.1} parent=0
    _
  %s8 = ssub.s32 1, %s6
  %s9 = scalar_select 0, %s8, %s6
  $region1: #{tpu_custom_call.1} parent=0
    #allocation2 [shape = 'u8[16384]{0}', space=vmem, size = 0x4000, scoped, tag = 'input window, operand 0']
    #allocation3 [shape = 's32[2]{0}', space=sflag, size = 0x8, scoped, tag = 'scoped memory for tpu_custom_call.1']
    #allocation4 [shape = 's32[2]{0}', space=sflag, size = 0x8, scoped, tag = 'scoped memory for tpu_custom_call.1']
    #allocation5 [shape = 'u8[196608]{0}', space=vmem, size = 0x30000, scoped, tag = 'input window, operand 1, single buffered']
    #allocation6 [shape = 's32[1]{0}', space=sflag, size = 0x4, scoped, tag = 'scoped memory for tpu_custom_call.1']
    #allocation7 [shape = 'u8[196608]{0}', space=vmem, size = 0x30000, scoped, tag = 'input window, operand 3, single buffered']
    #allocation8 [shape = 'u8[16384]{0}', space=vmem, size = 0x4000, scoped, tag = 'output window, operand 0']
    %10 = vsyncpa [#allocation3], 0
    %s11 = scalar_lea.sflag [#allocation3], 1
    %12 = vsyncpa %s11, 0
    %13 = vsyncpa [#allocation6], 0
    %14 = vsyncpa [#allocation4], 0
    %s15 = scalar_lea.sflag [#allocation4], 1
    %16 = vsyncpa %s15, 0
    loop: start=0, step=1, limit=4
    $region2: #{tpu_custom_call.1} parent=1 // loop_pre_header
      _
    $region3: #{tpu_custom_call.1} parent=1 // loop_header
      %s18 = sphi 0, %s22
      %p19 = scmp.ge.s32.totalorder %s18, 4
      %s28 = sphi 0, %s30
      %s31 = sphi 0, %s28
      %s32 = sphi 0, %s31
      %s48 = sphi 0, %s32
      %s52 = sphi 0, %s52
      %s54 = sphi 0, %s52
      %s55 = sphi 0, %s54
      %s69 = sphi 0, %s55
      %s73 = sphi 0, %s73
      %s75 = sphi 0, %s73
      %s76 = sphi 0, %s75
      %s90 = sphi 0, %s76
      %s94 = sphi 0, %s94
      %s96 = sphi 0, %s94
      %s97 = sphi 0, %s96
      %s111 = sphi 0, %s97
      %s115 = sphi 0, %s115
      %s117 = sphi 0, %s115
      %s118 = sphi 0, %s117
      %s132 = sphi 0, %s118
      %s138 = sphi 0, %s140
      %s141 = sphi 0, %s138
      %s142 = sphi 0, %s141
      %s158 = sphi 0, %s142
    $region4: #{tpu_custom_call.1} parent=1 // loop_header_branch
      %21 = sbr.rel (%p19) target = $region8
    $region5: #{tpu_custom_call.1} parent=1 // loop_body
      %s23 = ssub.s32 %s18, 1
      %s24 = ssub.s32 %s18, 2
      %s25 = sadd.s32 %s18, 1
      %s26 = ssub.s32 %s18, %s25
      %p27 = scmp.eq.s32.totalorder %s26, 0
      %s29 = sadd.s32 %s28, 1
      %s30 = scalar_select %p27, %s28, %s29
      %p33 = pneg %p27
      %p34 = scmp.eq.s32.totalorder %s18, 1
      %p35 = por %p33, %p34
      %p36 = scmp.ne.s32.totalorder %s28, %s31
      %p37 = scmp.eq.s32.totalorder %s18, 0
      %p38 = por %p36, %p37
      %p39 = scmp.ne.s32.totalorder %s28, %s31
      %p40 = scmp.eq.s32.totalorder %s23, 1
      %p41 = por %p39, %p40
      %p42 = scmp.ne.s32.totalorder %s31, %s32
      %p43 = scmp.eq.s32.totalorder %s23, 0
      %p44 = por %p42, %p43
      %p45 = scmp.ne.s32.totalorder %s31, %s32
      %p46 = scmp.eq.s32.totalorder %s24, 1
      %p47 = por %p45, %p46
      %p49 = scmp.ne.s32.totalorder %s32, %s48
      %p50 = scmp.eq.s32.totalorder %s24, 0
      %p51 = por %p49, %p50
      %s53 = sadd.s32 %s52, 1
      %p56 = scmp.eq.s32.totalorder %s18, 1
      %p57 = scmp.ne.s32.totalorder %s52, %s54
      %p58 = scmp.eq.s32.totalorder %s18, 0
      %p59 = por %p57, %p58
      %p60 = scmp.ne.s32.totalorder %s52, %s54
      %p61 = scmp.eq.s32.totalorder %s23, 1
      %p62 = por %p60, %p61
      %p63 = scmp.ne.s32.totalorder %s54, %s55
      %p64 = scmp.eq.s32.totalorder %s23, 0
      %p65 = por %p63, %p64
      %p66 = scmp.ne.s32.totalorder %s54, %s55
      %p67 = scmp.eq.s32.totalorder %s24, 1
      %p68 = por %p66, %p67
      %p70 = scmp.ne.s32.totalorder %s55, %s69
      %p71 = scmp.eq.s32.totalorder %s24, 0
      %p72 = por %p70, %p71
      %s74 = sadd.s32 %s73, 1
      %p77 = scmp.eq.s32.totalorder %s18, 1
      %p78 = scmp.ne.s32.totalorder %s73, %s75
      %p79 = scmp.eq.s32.totalorder %s18, 0
      %p80 = por %p78, %p79
      %p81 = scmp.ne.s32.totalorder %s73, %s75
      %p82 = scmp.eq.s32.totalorder %s23, 1
      %p83 = por %p81, %p82
      %p84 = scmp.ne.s32.totalorder %s75, %s76
      %p85 = scmp.eq.s32.totalorder %s23, 0
      %p86 = por %p84, %p85
      %p87 = scmp.ne.s32.totalorder %s75, %s76
      %p88 = scmp.eq.s32.totalorder %s24, 1
      %p89 = por %p87, %p88
      %p91 = scmp.ne.s32.totalorder %s76, %s90
      %p92 = scmp.eq.s32.totalorder %s24, 0
      %p93 = por %p91, %p92
      %s95 = sadd.s32 %s94, 1
      %p98 = scmp.eq.s32.totalorder %s18, 1
      %p99 = scmp.ne.s32.totalorder %s94, %s96
      %p100 = scmp.eq.s32.totalorder %s18, 0
      %p101 = por %p99, %p100
      %p102 = scmp.ne.s32.totalorder %s94, %s96
      %p103 = scmp.eq.s32.totalorder %s23, 1
      %p104 = por %p102, %p103
      %p105 = scmp.ne.s32.totalorder %s96, %s97
      %p106 = scmp.eq.s32.totalorder %s23, 0
      %p107 = por %p105, %p106
      %p108 = scmp.ne.s32.totalorder %s96, %s97
      %p109 = scmp.eq.s32.totalorder %s24, 1
      %p110 = por %p108, %p109
      %p112 = scmp.ne.s32.totalorder %s97, %s111
      %p113 = scmp.eq.s32.totalorder %s24, 0
      %p114 = por %p112, %p113
      %s116 = sadd.s32 %s115, 1
      %p119 = scmp.eq.s32.totalorder %s18, 1
      %p120 = scmp.ne.s32.totalorder %s115, %s117
      %p121 = scmp.eq.s32.totalorder %s18, 0
      %p122 = por %p120, %p121
      %p123 = scmp.ne.s32.totalorder %s115, %s117
      %p124 = scmp.eq.s32.totalorder %s23, 1
      %p125 = por %p123, %p124
      %p126 = scmp.ne.s32.totalorder %s117, %s118
      %p127 = scmp.eq.s32.totalorder %s23, 0
      %p128 = por %p126, %p127
      %p129 = scmp.ne.s32.totalorder %s117, %s118
      %p130 = scmp.eq.s32.totalorder %s24, 1
      %p131 = por %p129, %p130
      %p133 = scmp.ne.s32.totalorder %s118, %s132
      %p134 = scmp.eq.s32.totalorder %s24, 0
      %p135 = por %p133, %p134
      %s136 = ssub.s32 %s18, %s25
      %p137 = scmp.eq.s32.totalorder %s136, 0
      %s139 = sadd.s32 %s138, 1
      %s140 = scalar_select %p137, %s138, %s139
      %p143 = pneg %p137
      %p144 = scmp.eq.s32.totalorder %s18, 1
      %p145 = por %p143, %p144
      %p146 = scmp.ne.s32.totalorder %s138, %s141
      %p147 = scmp.eq.s32.totalorder %s18, 0
      %p148 = por %p146, %p147
      %p149 = scmp.ne.s32.totalorder %s138, %s141
      %p150 = scmp.eq.s32.totalorder %s23, 1
      %p151 = por %p149, %p150
      %p152 = scmp.ne.s32.totalorder %s141, %s142
      %p153 = scmp.eq.s32.totalorder %s23, 0
      %p154 = por %p152, %p153
      %p155 = scmp.ne.s32.totalorder %s141, %s142
      %p156 = scmp.eq.s32.totalorder %s24, 1
      %p157 = por %p155, %p156
      %p159 = scmp.ne.s32.totalorder %s142, %s158
      %p160 = scmp.eq.s32.totalorder %s24, 0
      %p161 = por %p159, %p160
      %p162 = scmp.le.s32.totalorder 1, %s18
      %p163 = scmp.lt.s32.totalorder %s18, 3
      %p164 = pnand %p162, %p163
      %p165 = pneg %p164
      // Predicated region
      $region9: #{tpu_custom_call.1} parent=5 // pred_check
        _
      $region10: #{tpu_custom_call.1} parent=5 // pred_check_branch
        %167 = sbr.rel (%p164) target = $region12
      $region11: #{tpu_custom_call.1} parent=5 // pred_region
        %s168 = ssub.s32 %s18, 1
        // Predicated region
        $region13: #{tpu_custom_call.1} parent=11 // pred_check
          %p169 = pneg %p65
        $region14: #{tpu_custom_call.1} parent=11 // pred_check_branch
          %171 = sbr.rel (%p169) target = $region16
        $region15: #{tpu_custom_call.1} parent=11 // pred_region
          %s173 = ssub.s32 6144, 6144
          %174 = vsyncadd [#allocation6], %s173
          %s175 = sshll.u32 [#allocation5], 4
          %s176 = int_to_ptr.vmem [resolvable:$true] %s175
          %181 = dma.hbm_to_vmem [thread:$0]  %s1, 6144, %s176, [#allocation6], 128, 128, 8
        $region16: #{tpu_custom_call.1} parent=11 // pred_fallthru
          _
        // Predicated region
        $region17: #{tpu_custom_call.1} parent=11 // pred_check
          %p182 = pneg %p86
        $region18: #{tpu_custom_call.1} parent=11 // pred_check_branch
          %184 = sbr.rel (%p182) target = $region20
        $region19: #{tpu_custom_call.1} parent=11 // pred_region
          _
        $region20: #{tpu_custom_call.1} parent=11 // pred_fallthru
          _
        // Predicated region
        $region21: #{tpu_custom_call.1} parent=11 // pred_check
          %p185 = pneg %p107
        $region22: #{tpu_custom_call.1} parent=11 // pred_check_branch
          %187 = sbr.rel (%p185) target = $region24
        $region23: #{tpu_custom_call.1} parent=11 // pred_region
          %s189 = ssub.s32 6144, 6144
          %190 = vsyncadd [#allocation6], %s189
          %s191 = sshll.u32 [#allocation7], 4
          %s192 = int_to_ptr.vmem [resolvable:$true] %s191
          %197 = dma.hbm_to_vmem [thread:$0]  %s3, 6144, %s192, [#allocation6], 128, 128, 8
        $region24: #{tpu_custom_call.1} parent=11 // pred_fallthru
          _
        // Predicated region
        $region25: #{tpu_custom_call.1} parent=11 // pred_check
          %p198 = pneg %p128
        $region26: #{tpu_custom_call.1} parent=11 // pred_check_branch
          %200 = sbr.rel (%p198) target = $region28
        $region27: #{tpu_custom_call.1} parent=11 // pred_region
          _
        $region28: #{tpu_custom_call.1} parent=11 // pred_fallthru
          _
      $region12: #{tpu_custom_call.1} parent=5 // pred_fallthru
        _
      %p201 = scmp.lt.s32.totalorder %s18, 2
      // Predicated region
      $region29: #{tpu_custom_call.1} parent=5 // pred_check
        %p202 = pneg %p201
      $region30: #{tpu_custom_call.1} parent=5 // pred_check_branch
        %204 = sbr.rel (%p202) target = $region32
      $region31: #{tpu_custom_call.1} parent=5 // pred_region
        // Predicated region
        $region33: #{tpu_custom_call.1} parent=31 // pred_check
          %p205 = pneg %p38
        $region34: #{tpu_custom_call.1} parent=31 // pred_check_branch
          %207 = sbr.rel (%p205) target = $region36
        $region35: #{tpu_custom_call.1} parent=31 // pred_region
          %s208 = sand.u32 %s28, 1
          %s209 = scalar_lea.sflag [#allocation3], %s208
          %s210 = sand.u32 %s28, 1
          %s211 = smul.addr %s210, 16
          %s212 = scalar_lea.vmem [#allocation2], %s211
          %s214 = ssub.s32 256, 256
          %215 = vsyncadd %s209, %s214
          %s216 = smul.addr %s18, 2
          %s217 = smul.addr %s216, 128
          %s218 = scalar_lea.hbm %s0, %s217
          %s219 = sshll.u32 %s212, 4
          %s220 = int_to_ptr.vmem [resolvable:$true] %s219
          %225 = dma.hbm_to_vmem [thread:$0]  %s218, 256, %s220, %s209, 128, 128, 8
        $region36: #{tpu_custom_call.1} parent=31 // pred_fallthru
          _
      $region32: #{tpu_custom_call.1} parent=5 // pred_fallthru
        _
      %p226 = scmp.le.s32.totalorder 1, %s18
      %p227 = scmp.lt.s32.totalorder %s18, 3
      %p228 = pnand %p226, %p227
      %p229 = pneg %p228
      // Predicated region
      $region37: #{tpu_custom_call.1} parent=5 // pred_check
        _
      $region38: #{tpu_custom_call.1} parent=5 // pred_check_branch
        %231 = sbr.rel (%p228) target = $region40
      $region39: #{tpu_custom_call.1} parent=5 // pred_region
        %s232 = ssub.s32 %s18, 1
        %s233 = sand.u32 %s31, 1
        %s234 = scalar_lea.sflag [#allocation3], %s233
        %s235 = sand.u32 %s31, 1
        %s236 = smul.addr %s235, 16
        %s237 = scalar_lea.vmem [#allocation2], %s236
        // Predicated region
        $region41: #{tpu_custom_call.1} parent=39 // pred_check
          %p238 = pneg %p44
        $region42: #{tpu_custom_call.1} parent=39 // pred_check_branch
          %240 = sbr.rel (%p238) target = $region44
        $region43: #{tpu_custom_call.1} parent=39 // pred_region
          %241 = dma.done %s234, 256
        $region44: #{tpu_custom_call.1} parent=39 // pred_fallthru
          _
        // Predicated region
        $region45: #{tpu_custom_call.1} parent=39 // pred_check
          %p242 = pneg %p65
        $region46: #{tpu_custom_call.1} parent=39 // pred_check_branch
          %244 = sbr.rel (%p242) target = $region48
        $region47: #{tpu_custom_call.1} parent=39 // pred_region
          %245 = dma.done [#allocation6], 6144
        $region48: #{tpu_custom_call.1} parent=39 // pred_fallthru
          _
        // Predicated region
        $region49: #{tpu_custom_call.1} parent=39 // pred_check
          %p246 = pneg %p107
        $region50: #{tpu_custom_call.1} parent=39 // pred_check_branch
          %248 = sbr.rel (%p246) target = $region52
        $region51: #{tpu_custom_call.1} parent=39 // pred_region
          %249 = dma.done [#allocation6], 6144
        $region52: #{tpu_custom_call.1} parent=39 // pred_fallthru
          _
        %s250 = sand.u32 %s31, 1
        %s251 = scalar_lea.sflag [#allocation3], %s250
        %s252 = sand.u32 %s31, 1
        %s253 = smul.addr %s252, 16
        %s254 = scalar_lea.vmem [#allocation2], %s253
        %p255 = pneg %p44
        %p256 = pneg %p41
        %p257 = pneg %p65
        %p258 = pneg %p62
        %p259 = pneg %p86
        %p260 = pneg %p83
        %p261 = pneg %p107
        %p262 = pneg %p104
        %p263 = pneg %p128
        %p264 = pneg %p125
        %p265 = pneg %p154
        %p266 = pneg %p151
        %s267 = sand.u32 %s141, 1
        %s268 = scalar_lea.sflag [#allocation4], %s267
        %s269 = sand.u32 %s141, 1
        %s270 = smul.addr %s269, 16
        %s271 = scalar_lea.vmem [#allocation8], %s270
        %v272 = vld [vmem:[%s237] sm:$0xff]
        %v273 = vld [vmem:[%s237 + $0x8] sm:$0xff]
        %v274 = vld [vmem:[%s2] sm:$0x1]
        %v276 = vlaneseq
        %v277 = vshrl.u32 %v276, 7
        %v278 = vsub.s32 0, %v277
        %v279 = vrot.slane %v274, %v278
        %vm283 = vcmask 1040384
        %v284 = vrot.slane %v272, 7
        %v285 = vrot.slane %v273, 7
        %v286 = vsel %vm283, %v284, %v285
        %v289 = vsel %vm283, 0.0, %v284
        %v290 = vld [vmem:[#allocation5] sm:$0xff]
        %v291 = vld [vmem:[#allocation5 + $0x8] sm:$0xff]
        %v292 = vld [vmem:[#allocation5 + $0x10] sm:$0xff]
        %v293 = vld [vmem:[#allocation5 + $0x18] sm:$0xff]
        %v294 = vld [vmem:[#allocation5 + $0x20] sm:$0xff]
        %v295 = vld [vmem:[#allocation5 + $0x28] sm:$0xff]
        %v296 = vld [vmem:[#allocation5 + $0x30] sm:$0xff]
        %v297 = vld [vmem:[#allocation5 + $0x38] sm:$0xff]
        %v298 = vld [vmem:[#allocation5 + $0x40] sm:$0xff]
        %v299 = vld [vmem:[#allocation5 + $0x48] sm:$0xff]
        %v300 = vld [vmem:[#allocation5 + $0x50] sm:$0xff]
        %v301 = vld [vmem:[#allocation5 + $0x58] sm:$0xff]
        %v302 = vld [vmem:[#allocation5 + $0x60] sm:$0xff]
        %v303 = vld [vmem:[#allocation5 + $0x68] sm:$0xff]
        %v304 = vld [vmem:[#allocation5 + $0x70] sm:$0xff]
        %v305 = vld [vmem:[#allocation5 + $0x78] sm:$0xff]
        %306 = vmatprep.subr.mxu0 0.0
        %307 = vmatpush1.msra.mxu0 %v290
        %308 = vmatprep.subr.mxu0 0.0
        %309 = vmatpush1.msra.mxu0 %v291
        %310 = vmatprep.subr.mxu0 0.0
        %311 = vmatpush1.msra.mxu0 %v292
        %312 = vmatprep.subr.mxu0 0.0
        %313 = vmatpush1.msra.mxu0 %v293
        %314 = vmatprep.subr.mxu0 0.0
        %315 = vmatpush1.msra.mxu0 %v294
        %316 = vmatprep.subr.mxu0 0.0
        %317 = vmatpush1.msra.mxu0 %v295
        %318 = vmatprep.subr.mxu0 0.0
        %319 = vmatpush1.msra.mxu0 %v296
        %320 = vmatprep.subr.mxu0 0.0
        %321 = vmatpush1.msra.mxu0 %v297
        %322 = vmatprep.subr.mxu0 0.0
        %323 = vmatpush1.msra.mxu0 %v298
        %324 = vmatprep.subr.mxu0 0.0
        %325 = vmatpush1.msra.mxu0 %v299
        %326 = vmatprep.subr.mxu0 0.0
        %327 = vmatpush1.msra.mxu0 %v300
        %328 = vmatprep.subr.mxu0 0.0
        %329 = vmatpush1.msra.mxu0 %v301
        %330 = vmatprep.subr.mxu0 0.0
        %331 = vmatpush1.msra.mxu0 %v302
        %332 = vmatprep.subr.mxu0 0.0
        %333 = vmatpush1.msra.mxu0 %v303
        %334 = vmatprep.subr.mxu0 0.0
        %335 = vmatpush1.msra.mxu0 %v304
        %336 = vmatprep.subr.mxu0 0.0
        %337 = vmatpush1.msra.mxu0 %v305
        %338 = vmatprep.subr.mxu0 0.0
        %339 = vmatpush1.msra.mxu0 0.0
        %340 = vmatprep.subr.mxu0 0.0
        %341 = vmatpush1.msra.mxu0 0.0
        %342 = vmatprep.subr.mxu0 0.0
        %343 = vmatpush1.msra.mxu0 0.0
        %344 = vmatprep.subr.mxu0 0.0
        %345 = vmatpush1.msra.mxu0 0.0
        %346 = vmatprep.subr.mxu0 0.0
        %347 = vmatpush1.msra.mxu0 0.0
        %348 = vmatprep.subr.mxu0 0.0
        %349 = vmatpush1.msra.mxu0 0.0
        %350 = vmatprep.subr.mxu0 0.0
        %351 = vmatpush1.msra.mxu0 0.0
        %352 = vmatprep.subr.mxu0 0.0
        %353 = vmatpush1.msra.mxu0 0.0
        %354 = vmatprep.subr.mxu0 0.0
        %355 = vmatpush1.msra.mxu0 0.0
        %356 = vmatprep.subr.mxu0 0.0
        %357 = vmatpush1.msra.mxu0 0.0
        %358 = vmatprep.subr.mxu0 0.0
        %359 = vmatpush1.msra.mxu0 0.0
        %360 = vmatprep.subr.mxu0 0.0
        %361 = vmatpush1.msra.mxu0 0.0
        %362 = vmatprep.subr.mxu0 0.0
        %363 = vmatpush1.msra.mxu0 0.0
        %364 = vmatprep.subr.mxu0 0.0
        %365 = vmatpush1.msra.mxu0 0.0
        %366 = vmatprep.subr.mxu0 0.0
        %367 = vmatpush1.msra.mxu0 0.0
        %368 = vmatprep.subr.mxu0 0.0
        %369 = vmatpush1.msra.mxu0 0.0
        %370 = vmatprep.mubr.f32.mxu0 0.0
        %371 = vmatmul.mubr.f32.gmra.mrb[0].mxu0 %v289
        %v372 = vpop.f32.mrb[0].mxu0
        %v373 = vadd.f32 0.0, %v372
        %v374 = vpop.f32.mrb[0].mxu0
        %375 = vmatprep.mubr.f32.mxu0 0.0
        %376 = vmatmul.mubr.f32.gmra.mrb[0].mxu0 %v286
        %v377 = vpop.f32.mrb[0].mxu0
        %v378 = vadd.f32 0.0, %v377
        %v379 = vpop.f32.mrb[0].mxu0
        %380 = vdwg.mxu0
        %v381 = vadd.f32 %v279, %v373
        %v382 = vadd.f32 %v279, %v378
        %s383 = scalar_lea.vmem [#allocation5], 128
        %v384 = vld [vmem:[%s383] sm:$0xff]
        %v385 = vld [vmem:[%s383 + $0x8] sm:$0xff]
        %v386 = vld [vmem:[%s383 + $0x10] sm:$0xff]
        %v387 = vld [vmem:[%s383 + $0x18] sm:$0xff]
        %v388 = vld [vmem:[%s383 + $0x20] sm:$0xff]
        %v389 = vld [vmem:[%s383 + $0x28] sm:$0xff]
        %v390 = vld [vmem:[%s383 + $0x30] sm:$0xff]
        %v391 = vld [vmem:[%s383 + $0x38] sm:$0xff]
        %v392 = vld [vmem:[%s383 + $0x40] sm:$0xff]
        %v393 = vld [vmem:[%s383 + $0x48] sm:$0xff]
        %v394 = vld [vmem:[%s383 + $0x50] sm:$0xff]
        %v395 = vld [vmem:[%s383 + $0x58] sm:$0xff]
        %v396 = vld [vmem:[%s383 + $0x60] sm:$0xff]
        %v397 = vld [vmem:[%s383 + $0x68] sm:$0xff]
        %v398 = vld [vmem:[%s383 + $0x70] sm:$0xff]
        %v399 = vld [vmem:[%s383 + $0x78] sm:$0xff]
        %400 = vmatprep.subr.mxu0 0.0
        %401 = vmatpush1.msra.mxu0 %v384
        %402 = vmatprep.subr.mxu0 0.0
        %403 = vmatpush1.msra.mxu0 %v385
        %404 = vmatprep.subr.mxu0 0.0
        %405 = vmatpush1.msra.mxu0 %v386
        %406 = vmatprep.subr.mxu0 0.0
        %407 = vmatpush1.msra.mxu0 %v387
        %408 = vmatprep.subr.mxu0 0.0
        %409 = vmatpush1.msra.mxu0 %v388
        %410 = vmatprep.subr.mxu0 0.0
        %411 = vmatpush1.msra.mxu0 %v389
        %412 = vmatprep.subr.mxu0 0.0
        %413 = vmatpush1.msra.mxu0 %v390
        %414 = vmatprep.subr.mxu0 0.0
        %415 = vmatpush1.msra.mxu0 %v391
        %416 = vmatprep.subr.mxu0 0.0
        %417 = vmatpush1.msra.mxu0 %v392
        %418 = vmatprep.subr.mxu0 0.0
        %419 = vmatpush1.msra.mxu0 %v393
        %420 = vmatprep.subr.mxu0 0.0
        %421 = vmatpush1.msra.mxu0 %v394
        %422 = vmatprep.subr.mxu0 0.0
        %423 = vmatpush1.msra.mxu0 %v395
        %424 = vmatprep.subr.mxu0 0.0
        %425 = vmatpush1.msra.mxu0 %v396
        %426 = vmatprep.subr.mxu0 0.0
        %427 = vmatpush1.msra.mxu0 %v397
        %428 = vmatprep.subr.mxu0 0.0
        %429 = vmatpush1.msra.mxu0 %v398
        %430 = vmatprep.subr.mxu0 0.0
        %431 = vmatpush1.msra.mxu0 %v399
        %432 = vmatprep.subr.mxu0 0.0
        %433 = vmatpush1.msra.mxu0 0.0
        %434 = vmatprep.subr.mxu0 0.0
        %435 = vmatpush1.msra.mxu0 0.0
        %436 = vmatprep.subr.mxu0 0.0
        %437 = vmatpush1.msra.mxu0 0.0
        %438 = vmatprep.subr.mxu0 0.0
        %439 = vmatpush1.msra.mxu0 0.0
        %440 = vmatprep.subr.mxu0 0.0
        %441 = vmatpush1.msra.mxu0 0.0
        %442 = vmatprep.subr.mxu0 0.0
        %443 = vmatpush1.msra.mxu0 0.0
        %444 = vmatprep.subr.mxu0 0.0
        %445 = vmatpush1.msra.mxu0 0.0
        %446 = vmatprep.subr.mxu0 0.0
        %447 = vmatpush1.msra.mxu0 0.0
        %448 = vmatprep.subr.mxu0 0.0
        %449 = vmatpush1.msra.mxu0 0.0
        %450 = vmatprep.subr.mxu0 0.0
        %451 = vmatpush1.msra.mxu0 0.0
        %452 = vmatprep.subr.mxu0 0.0
        %453 = vmatpush1.msra.mxu0 0.0
        %454 = vmatprep.subr.mxu0 0.0
        %455 = vmatpush1.msra.mxu0 0.0
        %456 = vmatprep.subr.mxu0 0.0
        %457 = vmatpush1.msra.mxu0 0.0
        %458 = vmatprep.subr.mxu0 0.0
        %459 = vmatpush1.msra.mxu0 0.0
        %460 = vmatprep.subr.mxu0 0.0
        %461 = vmatpush1.msra.mxu0 0.0
        %462 = vmatprep.subr.mxu0 0.0
        %463 = vmatpush1.msra.mxu0 0.0
        %464 = vmatprep.mubr.f32.mxu0 0.0
        %465 = vmatmul.mubr.f32.gmra.mrb[0].mxu0 %v272
        %v466 = vpop.f32.mrb[0].mxu0
        %v467 = vadd.f32 0.0, %v466
        %v468 = vpop.f32.mrb[0].mxu0
        %469 = vmatprep.mubr.f32.mxu0 0.0
        %470 = vmatmul.mubr.f32.gmra.mrb[0].mxu0 %v273
        %v471 = vpop.f32.mrb[0].mxu0
        %v472 = vadd.f32 0.0, %v471
        %v473 = vpop.f32.mrb[0].mxu0
        %474 = vdwg.mxu0
        %v475 = vadd.f32 %v381, %v467
        %v476 = vadd.f32 %v382, %v472
        %vm477 = vcmask 1046528
        %v478 = vrot.slane %v272, 1
        %v479 = vrot.slane %v273, 1
        %v480 = vsel %vm477, %v478, %v479
        %v483 = vsel %vm477, %v479, 0.0
        %s484 = scalar_lea.vmem [#allocation5], 256
        %v485 = vld [vmem:[%s484] sm:$0xff]
        %v486 = vld [vmem:[%s484 + $0x8] sm:$0xff]
        %v487 = vld [vmem:[%s484 + $0x10] sm:$0xff]
        %v488 = vld [vmem:[%s484 + $0x18] sm:$0xff]
        %v489 = vld [vmem:[%s484 + $0x20] sm:$0xff]
        %v490 = vld [vmem:[%s484 + $0x28] sm:$0xff]
        %v491 = vld [vmem:[%s484 + $0x30] sm:$0xff]
        %v492 = vld [vmem:[%s484 + $0x38] sm:$0xff]
        %v493 = vld [vmem:[%s484 + $0x40] sm:$0xff]
        %v494 = vld [vmem:[%s484 + $0x48] sm:$0xff]
        %v495 = vld [vmem:[%s484 + $0x50] sm:$0xff]
        %v496 = vld [vmem:[%s484 + $0x58] sm:$0xff]
        %v497 = vld [vmem:[%s484 + $0x60] sm:$0xff]
        %v498 = vld [vmem:[%s484 + $0x68] sm:$0xff]
        %v499 = vld [vmem:[%s484 + $0x70] sm:$0xff]
        %v500 = vld [vmem:[%s484 + $0x78] sm:$0xff]
        %501 = vmatprep.subr.mxu0 0.0
        %502 = vmatpush1.msra.mxu0 %v485
        %503 = vmatprep.subr.mxu0 0.0
        %504 = vmatpush1.msra.mxu0 %v486
        %505 = vmatprep.subr.mxu0 0.0
        %506 = vmatpush1.msra.mxu0 %v487
        %507 = vmatprep.subr.mxu0 0.0
        %508 = vmatpush1.msra.mxu0 %v488
        %509 = vmatprep.subr.mxu0 0.0
        %510 = vmatpush1.msra.mxu0 %v489
        %511 = vmatprep.subr.mxu0 0.0
        %512 = vmatpush1.msra.mxu0 %v490
        %513 = vmatprep.subr.mxu0 0.0
        %514 = vmatpush1.msra.mxu0 %v491
        %515 = vmatprep.subr.mxu0 0.0
        %516 = vmatpush1.msra.mxu0 %v492
        %517 = vmatprep.subr.mxu0 0.0
        %518 = vmatpush1.msra.mxu0 %v493
        %519 = vmatprep.subr.mxu0 0.0
        %520 = vmatpush1.msra.mxu0 %v494
        %521 = vmatprep.subr.mxu0 0.0
        %522 = vmatpush1.msra.mxu0 %v495
        %523 = vmatprep.subr.mxu0 0.0
        %524 = vmatpush1.msra.mxu0 %v496
        %525 = vmatprep.subr.mxu0 0.0
        %526 = vmatpush1.msra.mxu0 %v497
        %527 = vmatprep.subr.mxu0 0.0
        %528 = vmatpush1.msra.mxu0 %v498
        %529 = vmatprep.subr.mxu0 0.0
        %530 = vmatpush1.msra.mxu0 %v499
        %531 = vmatprep.subr.mxu0 0.0
        %532 = vmatpush1.msra.mxu0 %v500
        %533 = vmatprep.subr.mxu0 0.0
        %534 = vmatpush1.msra.mxu0 0.0
        %535 = vmatprep.subr.mxu0 0.0
        %536 = vmatpush1.msra.mxu0 0.0
        %537 = vmatprep.subr.mxu0 0.0
        %538 = vmatpush1.msra.mxu0 0.0
        %539 = vmatprep.subr.mxu0 0.0
        %540 = vmatpush1.msra.mxu0 0.0
        %541 = vmatprep.subr.mxu0 0.0
        %542 = vmatpush1.msra.mxu0 0.0
        %543 = vmatprep.subr.mxu0 0.0
        %544 = vmatpush1.msra.mxu0 0.0
        %545 = vmatprep.subr.mxu0 0.0
        %546 = vmatpush1.msra.mxu0 0.0
        %547 = vmatprep.subr.mxu0 0.0
        %548 = vmatpush1.msra.mxu0 0.0
        %549 = vmatprep.subr.mxu0 0.0
        %550 = vmatpush1.msra.mxu0 0.0
        %551 = vmatprep.subr.mxu0 0.0
        %552 = vmatpush1.msra.mxu0 0.0
        %553 = vmatprep.subr.mxu0 0.0
        %554 = vmatpush1.msra.mxu0 0.0
        %555 = vmatprep.subr.mxu0 0.0
        %556 = vmatpush1.msra.mxu0 0.0
        %557 = vmatprep.subr.mxu0 0.0
        %558 = vmatpush1.msra.mxu0 0.0
        %559 = vmatprep.subr.mxu0 0.0
        %560 = vmatpush1.msra.mxu0 0.0
        %561 = vmatprep.subr.mxu0 0.0
        %562 = vmatpush1.msra.mxu0 0.0
        %563 = vmatprep.subr.mxu0 0.0
        %564 = vmatpush1.msra.mxu0 0.0
        %565 = vmatprep.mubr.f32.mxu0 0.0
        %566 = vmatmul.mubr.f32.gmra.mrb[0].mxu0 %v480
        %v567 = vpop.f32.mrb[0].mxu0
        %v568 = vadd.f32 0.0, %v567
        %v569 = vpop.f32.mrb[0].mxu0
        %570 = vmatprep.mubr.f32.mxu0 0.0
        %571 = vmatmul.mubr.f32.gmra.mrb[0].mxu0 %v483
        %v572 = vpop.f32.mrb[0].mxu0
        %v573 = vadd.f32 0.0, %v572
        %v574 = vpop.f32.mrb[0].mxu0
        %575 = vdwg.mxu0
        %v576 = vadd.f32 %v475, %v568
        %v577 = vadd.f32 %v476, %v573
        %v578 = vmax.f32 %v576, 0.0
        %v579 = vmax.f32 %v577, 0.0
        %v580 = vld [vmem:[%s4] sm:$0x1]
        %v582 = vlaneseq
        %v583 = vshrl.u32 %v582, 7
        %v584 = vsub.s32 0, %v583
        %v585 = vrot.slane %v580, %v584
        %v589 = vrot.slane %v578, 7
        %v590 = vrot.slane %v579, 7
        %v591 = vsel %vm283, %v589, %v590
        %v594 = vsel %vm283, 0.0, %v589
        %v595 = vld [vmem:[#allocation7] sm:$0xff]
        %v596 = vld [vmem:[#allocation7 + $0x8] sm:$0xff]
        %v597 = vld [vmem:[#allocation7 + $0x10] sm:$0xff]
        %v598 = vld [vmem:[#allocation7 + $0x18] sm:$0xff]
        %v599 = vld [vmem:[#allocation7 + $0x20] sm:$0xff]
        %v600 = vld [vmem:[#allocation7 + $0x28] sm:$0xff]
        %v601 = vld [vmem:[#allocation7 + $0x30] sm:$0xff]
        %v602 = vld [vmem:[#allocation7 + $0x38] sm:$0xff]
        %v603 = vld [vmem:[#allocation7 + $0x40] sm:$0xff]
        %v604 = vld [vmem:[#allocation7 + $0x48] sm:$0xff]
        %v605 = vld [vmem:[#allocation7 + $0x50] sm:$0xff]
        %v606 = vld [vmem:[#allocation7 + $0x58] sm:$0xff]
        %v607 = vld [vmem:[#allocation7 + $0x60] sm:$0xff]
        %v608 = vld [vmem:[#allocation7 + $0x68] sm:$0xff]
        %v609 = vld [vmem:[#allocation7 + $0x70] sm:$0xff]
        %v610 = vld [vmem:[#allocation7 + $0x78] sm:$0xff]
        %611 = vmatprep.subr.mxu0 0.0
        %612 = vmatpush1.msra.mxu0 %v595
        %613 = vmatprep.subr.mxu0 0.0
        %614 = vmatpush1.msra.mxu0 %v596
        %615 = vmatprep.subr.mxu0 0.0
        %616 = vmatpush1.msra.mxu0 %v597
        %617 = vmatprep.subr.mxu0 0.0
        %618 = vmatpush1.msra.mxu0 %v598
        %619 = vmatprep.subr.mxu0 0.0
        %620 = vmatpush1.msra.mxu0 %v599
        %621 = vmatprep.subr.mxu0 0.0
        %622 = vmatpush1.msra.mxu0 %v600
        %623 = vmatprep.subr.mxu0 0.0
        %624 = vmatpush1.msra.mxu0 %v601
        %625 = vmatprep.subr.mxu0 0.0
        %626 = vmatpush1.msra.mxu0 %v602
        %627 = vmatprep.subr.mxu0 0.0
        %628 = vmatpush1.msra.mxu0 %v603
        %629 = vmatprep.subr.mxu0 0.0
        %630 = vmatpush1.msra.mxu0 %v604
        %631 = vmatprep.subr.mxu0 0.0
        %632 = vmatpush1.msra.mxu0 %v605
        %633 = vmatprep.subr.mxu0 0.0
        %634 = vmatpush1.msra.mxu0 %v606
        %635 = vmatprep.subr.mxu0 0.0
        %636 = vmatpush1.msra.mxu0 %v607
        %637 = vmatprep.subr.mxu0 0.0
        %638 = vmatpush1.msra.mxu0 %v608
        %639 = vmatprep.subr.mxu0 0.0
        %640 = vmatpush1.msra.mxu0 %v609
        %641 = vmatprep.subr.mxu0 0.0
        %642 = vmatpush1.msra.mxu0 %v610
        %643 = vmatprep.subr.mxu0 0.0
        %644 = vmatpush1.msra.mxu0 0.0
        %645 = vmatprep.subr.mxu0 0.0
        %646 = vmatpush1.msra.mxu0 0.0
        %647 = vmatprep.subr.mxu0 0.0
        %648 = vmatpush1.msra.mxu0 0.0
        %649 = vmatprep.subr.mxu0 0.0
        %650 = vmatpush1.msra.mxu0 0.0
        %651 = vmatprep.subr.mxu0 0.0
        %652 = vmatpush1.msra.mxu0 0.0
        %653 = vmatprep.subr.mxu0 0.0
        %654 = vmatpush1.msra.mxu0 0.0
        %655 = vmatprep.subr.mxu0 0.0
        %656 = vmatpush1.msra.mxu0 0.0
        %657 = vmatprep.subr.mxu0 0.0
        %658 = vmatpush1.msra.mxu0 0.0
        %659 = vmatprep.subr.mxu0 0.0
        %660 = vmatpush1.msra.mxu0 0.0
        %661 = vmatprep.subr.mxu0 0.0
        %662 = vmatpush1.msra.mxu0 0.0
        %663 = vmatprep.subr.mxu0 0.0
        %664 = vmatpush1.msra.mxu0 0.0
        %665 = vmatprep.subr.mxu0 0.0
        %666 = vmatpush1.msra.mxu0 0.0
        %667 = vmatprep.subr.mxu0 0.0
        %668 = vmatpush1.msra.mxu0 0.0
        %669 = vmatprep.subr.mxu0 0.0
        %670 = vmatpush1.msra.mxu0 0.0
        %671 = vmatprep.subr.mxu0 0.0
        %672 = vmatpush1.msra.mxu0 0.0
        %673 = vmatprep.subr.mxu0 0.0
        %674 = vmatpush1.msra.mxu0 0.0
        %675 = vmatprep.mubr.f32.mxu0 0.0
        %676 = vmatmul.mubr.f32.gmra.mrb[0].mxu0 %v594
        %v677 = vpop.f32.mrb[0].mxu0
        %v678 = vadd.f32 0.0, %v677
        %v679 = vpop.f32.mrb[0].mxu0
        %680 = vmatprep.mubr.f32.mxu0 0.0
        %681 = vmatmul.mubr.f32.gmra.mrb[0].mxu0 %v591
        %v682 = vpop.f32.mrb[0].mxu0
        %v683 = vadd.f32 0.0, %v682
        %v684 = vpop.f32.mrb[0].mxu0
        %685 = vdwg.mxu0
        %v686 = vadd.f32 %v585, %v678
        %v687 = vadd.f32 %v585, %v683
        %s688 = scalar_lea.vmem [#allocation7], 128
        %v689 = vld [vmem:[%s688] sm:$0xff]
        %v690 = vld [vmem:[%s688 + $0x8] sm:$0xff]
        %v691 = vld [vmem:[%s688 + $0x10] sm:$0xff]
        %v692 = vld [vmem:[%s688 + $0x18] sm:$0xff]
        %v693 = vld [vmem:[%s688 + $0x20] sm:$0xff]
        %v694 = vld [vmem:[%s688 + $0x28] sm:$0xff]
        %v695 = vld [vmem:[%s688 + $0x30] sm:$0xff]
        %v696 = vld [vmem:[%s688 + $0x38] sm:$0xff]
        %v697 = vld [vmem:[%s688 + $0x40] sm:$0xff]
        %v698 = vld [vmem:[%s688 + $0x48] sm:$0xff]
        %v699 = vld [vmem:[%s688 + $0x50] sm:$0xff]
        %v700 = vld [vmem:[%s688 + $0x58] sm:$0xff]
        %v701 = vld [vmem:[%s688 + $0x60] sm:$0xff]
        %v702 = vld [vmem:[%s688 + $0x68] sm:$0xff]
        %v703 = vld [vmem:[%s688 + $0x70] sm:$0xff]
        %v704 = vld [vmem:[%s688 + $0x78] sm:$0xff]
        %705 = vmatprep.subr.mxu0 0.0
        %706 = vmatpush1.msra.mxu0 %v689
        %707 = vmatprep.subr.mxu0 0.0
        %708 = vmatpush1.msra.mxu0 %v690
        %709 = vmatprep.subr.mxu0 0.0
        %710 = vmatpush1.msra.mxu0 %v691
        %711 = vmatprep.subr.mxu0 0.0
        %712 = vmatpush1.msra.mxu0 %v692
        %713 = vmatprep.subr.mxu0 0.0
        %714 = vmatpush1.msra.mxu0 %v693
        %715 = vmatprep.subr.mxu0 0.0
        %716 = vmatpush1.msra.mxu0 %v694
        %717 = vmatprep.subr.mxu0 0.0
        %718 = vmatpush1.msra.mxu0 %v695
        %719 = vmatprep.subr.mxu0 0.0
        %720 = vmatpush1.msra.mxu0 %v696
        %721 = vmatprep.subr.mxu0 0.0
        %722 = vmatpush1.msra.mxu0 %v697
        %723 = vmatprep.subr.mxu0 0.0
        %724 = vmatpush1.msra.mxu0 %v698
        %725 = vmatprep.subr.mxu0 0.0
        %726 = vmatpush1.msra.mxu0 %v699
        %727 = vmatprep.subr.mxu0 0.0
        %728 = vmatpush1.msra.mxu0 %v700
        %729 = vmatprep.subr.mxu0 0.0
        %730 = vmatpush1.msra.mxu0 %v701
        %731 = vmatprep.subr.mxu0 0.0
        %732 = vmatpush1.msra.mxu0 %v702
        %733 = vmatprep.subr.mxu0 0.0
        %734 = vmatpush1.msra.mxu0 %v703
        %735 = vmatprep.subr.mxu0 0.0
        %736 = vmatpush1.msra.mxu0 %v704
        %737 = vmatprep.subr.mxu0 0.0
        %738 = vmatpush1.msra.mxu0 0.0
        %739 = vmatprep.subr.mxu0 0.0
        %740 = vmatpush1.msra.mxu0 0.0
        %741 = vmatprep.subr.mxu0 0.0
        %742 = vmatpush1.msra.mxu0 0.0
        %743 = vmatprep.subr.mxu0 0.0
        %744 = vmatpush1.msra.mxu0 0.0
        %745 = vmatprep.subr.mxu0 0.0
        %746 = vmatpush1.msra.mxu0 0.0
        %747 = vmatprep.subr.mxu0 0.0
        %748 = vmatpush1.msra.mxu0 0.0
        %749 = vmatprep.subr.mxu0 0.0
        %750 = vmatpush1.msra.mxu0 0.0
        %751 = vmatprep.subr.mxu0 0.0
        %752 = vmatpush1.msra.mxu0 0.0
        %753 = vmatprep.subr.mxu0 0.0
        %754 = vmatpush1.msra.mxu0 0.0
        %755 = vmatprep.subr.mxu0 0.0
        %756 = vmatpush1.msra.mxu0 0.0
        %757 = vmatprep.subr.mxu0 0.0
        %758 = vmatpush1.msra.mxu0 0.0
        %759 = vmatprep.subr.mxu0 0.0
        %760 = vmatpush1.msra.mxu0 0.0
        %761 = vmatprep.subr.mxu0 0.0
        %762 = vmatpush1.msra.mxu0 0.0
        %763 = vmatprep.subr.mxu0 0.0
        %764 = vmatpush1.msra.mxu0 0.0
        %765 = vmatprep.subr.mxu0 0.0
        %766 = vmatpush1.msra.mxu0 0.0
        %767 = vmatprep.subr.mxu0 0.0
        %768 = vmatpush1.msra.mxu0 0.0
        %769 = vmatprep.mubr.f32.mxu0 0.0
        %770 = vmatmul.mubr.f32.gmra.mrb[0].mxu0 %v578
        %v771 = vpop.f32.mrb[0].mxu0
        %v772 = vadd.f32 0.0, %v771
        %v773 = vpop.f32.mrb[0].mxu0
        %774 = vmatprep.mubr.f32.mxu0 0.0
        %775 = vmatmul.mubr.f32.gmra.mrb[0].mxu0 %v579
        %v776 = vpop.f32.mrb[0].mxu0
        %v777 = vadd.f32 0.0, %v776
        %v778 = vpop.f32.mrb[0].mxu0
        %779 = vdwg.mxu0
        %v780 = vadd.f32 %v686, %v772
        %v781 = vadd.f32 %v687, %v777
        %v782 = vrot.slane %v578, 1
        %v783 = vrot.slane %v579, 1
        %v784 = vsel %vm477, %v782, %v783
        %v787 = vsel %vm477, %v783, 0.0
        %s788 = scalar_lea.vmem [#allocation7], 256
        %v789 = vld [vmem:[%s788] sm:$0xff]
        %v790 = vld [vmem:[%s788 + $0x8] sm:$0xff]
        %v791 = vld [vmem:[%s788 + $0x10] sm:$0xff]
        %v792 = vld [vmem:[%s788 + $0x18] sm:$0xff]
        %v793 = vld [vmem:[%s788 + $0x20] sm:$0xff]
        %v794 = vld [vmem:[%s788 + $0x28] sm:$0xff]
        %v795 = vld [vmem:[%s788 + $0x30] sm:$0xff]
        %v796 = vld [vmem:[%s788 + $0x38] sm:$0xff]
        %v797 = vld [vmem:[%s788 + $0x40] sm:$0xff]
        %v798 = vld [vmem:[%s788 + $0x48] sm:$0xff]
        %v799 = vld [vmem:[%s788 + $0x50] sm:$0xff]
        %v800 = vld [vmem:[%s788 + $0x58] sm:$0xff]
        %v801 = vld [vmem:[%s788 + $0x60] sm:$0xff]
        %v802 = vld [vmem:[%s788 + $0x68] sm:$0xff]
        %v803 = vld [vmem:[%s788 + $0x70] sm:$0xff]
        %v804 = vld [vmem:[%s788 + $0x78] sm:$0xff]
        %805 = vmatprep.subr.mxu0 0.0
        %806 = vmatpush1.msra.mxu0 %v789
        %807 = vmatprep.subr.mxu0 0.0
        %808 = vmatpush1.msra.mxu0 %v790
        %809 = vmatprep.subr.mxu0 0.0
        %810 = vmatpush1.msra.mxu0 %v791
        %811 = vmatprep.subr.mxu0 0.0
        %812 = vmatpush1.msra.mxu0 %v792
        %813 = vmatprep.subr.mxu0 0.0
        %814 = vmatpush1.msra.mxu0 %v793
        %815 = vmatprep.subr.mxu0 0.0
        %816 = vmatpush1.msra.mxu0 %v794
        %817 = vmatprep.subr.mxu0 0.0
        %818 = vmatpush1.msra.mxu0 %v795
        %819 = vmatprep.subr.mxu0 0.0
        %820 = vmatpush1.msra.mxu0 %v796
        %821 = vmatprep.subr.mxu0 0.0
        %822 = vmatpush1.msra.mxu0 %v797
        %823 = vmatprep.subr.mxu0 0.0
        %824 = vmatpush1.msra.mxu0 %v798
        %825 = vmatprep.subr.mxu0 0.0
        %826 = vmatpush1.msra.mxu0 %v799
        %827 = vmatprep.subr.mxu0 0.0
        %828 = vmatpush1.msra.mxu0 %v800
        %829 = vmatprep.subr.mxu0 0.0
        %830 = vmatpush1.msra.mxu0 %v801
        %831 = vmatprep.subr.mxu0 0.0
        %832 = vmatpush1.msra.mxu0 %v802
        %833 = vmatprep.subr.mxu0 0.0
        %834 = vmatpush1.msra.mxu0 %v803
        %835 = vmatprep.subr.mxu0 0.0
        %836 = vmatpush1.msra.mxu0 %v804
        %837 = vmatprep.subr.mxu0 0.0
        %838 = vmatpush1.msra.mxu0 0.0
        %839 = vmatprep.subr.mxu0 0.0
        %840 = vmatpush1.msra.mxu0 0.0
        %841 = vmatprep.subr.mxu0 0.0
        %842 = vmatpush1.msra.mxu0 0.0
        %843 = vmatprep.subr.mxu0 0.0
        %844 = vmatpush1.msra.mxu0 0.0
        %845 = vmatprep.subr.mxu0 0.0
        %846 = vmatpush1.msra.mxu0 0.0
        %847 = vmatprep.subr.mxu0 0.0
        %848 = vmatpush1.msra.mxu0 0.0
        %849 = vmatprep.subr.mxu0 0.0
        %850 = vmatpush1.msra.mxu0 0.0
        %851 = vmatprep.subr.mxu0 0.0
        %852 = vmatpush1.msra.mxu0 0.0
        %853 = vmatprep.subr.mxu0 0.0
        %854 = vmatpush1.msra.mxu0 0.0
        %855 = vmatprep.subr.mxu0 0.0
        %856 = vmatpush1.msra.mxu0 0.0
        %857 = vmatprep.subr.mxu0 0.0
        %858 = vmatpush1.msra.mxu0 0.0
        %859 = vmatprep.subr.mxu0 0.0
        %860 = vmatpush1.msra.mxu0 0.0
        %861 = vmatprep.subr.mxu0 0.0
        %862 = vmatpush1.msra.mxu0 0.0
        %863 = vmatprep.subr.mxu0 0.0
        %864 = vmatpush1.msra.mxu0 0.0
        %865 = vmatprep.subr.mxu0 0.0
        %866 = vmatpush1.msra.mxu0 0.0
        %867 = vmatprep.subr.mxu0 0.0
        %868 = vmatpush1.msra.mxu0 0.0
        %869 = vmatprep.mubr.f32.mxu0 0.0
        %870 = vmatmul.mubr.f32.gmra.mrb[0].mxu0 %v784
        %v871 = vpop.f32.mrb[0].mxu0
        %v872 = vadd.f32 0.0, %v871
        %v873 = vpop.f32.mrb[0].mxu0
        %874 = vmatprep.mubr.f32.mxu0 0.0
        %875 = vmatmul.mubr.f32.gmra.mrb[0].mxu0 %v787
        %v876 = vpop.f32.mrb[0].mxu0
        %v877 = vadd.f32 0.0, %v876
        %v878 = vpop.f32.mrb[0].mxu0
        %879 = vdwg.mxu0
        %v880 = vadd.f32 %v780, %v872
        %v881 = vadd.f32 %v781, %v877
        %v882 = vadd.f32 %v880, %v272
        %v883 = vadd.f32 %v881, %v273
        %v884 = vmax.f32 %v882, 0.0
        %v885 = vmax.f32 %v883, 0.0
        %886 = vst [vmem:[%s271] sm:$0xff] %v884
        %887 = vst [vmem:[%s271 + $0x8] sm:$0xff] %v885
        %s888 = sand.u32 %s141, 1
        %s889 = scalar_lea.sflag [#allocation4], %s888
        %s890 = sand.u32 %s141, 1
        %s891 = smul.addr %s890, 16
        %s892 = scalar_lea.vmem [#allocation8], %s891
        // Predicated region
        $region53: #{tpu_custom_call.1} parent=39 // pred_check
          %p893 = pneg %p151
        $region54: #{tpu_custom_call.1} parent=39 // pred_check_branch
          %895 = sbr.rel (%p893) target = $region56
        $region55: #{tpu_custom_call.1} parent=39 // pred_region
          %s897 = ssub.s32 256, 256
          %898 = vsyncadd %s889, %s897
          %s899 = smul.addr %s23, 2
          %s900 = smul.addr %s899, 128
          %s901 = scalar_lea.hbm %s5, %s900
          %s902 = sshll.u32 %s892, 4
          %s903 = int_to_ptr.vmem [resolvable:$true] %s902
          %908 = dma.vmem_to_hbm [thread:$0]  %s903, 256, %s901, %s889, 128, 128, 8
        $region56: #{tpu_custom_call.1} parent=39 // pred_fallthru
          _
      $region40: #{tpu_custom_call.1} parent=5 // pred_fallthru
        _
      %p909 = scmp.le.s32.totalorder 2, %s18
      // Predicated region
      $region57: #{tpu_custom_call.1} parent=5 // pred_check
        %p910 = pneg %p909
      $region58: #{tpu_custom_call.1} parent=5 // pred_check_branch
        %912 = sbr.rel (%p910) target = $region60
      $region59: #{tpu_custom_call.1} parent=5 // pred_region
        %s913 = ssub.s32 %s18, 2
        // Predicated region
        $region61: #{tpu_custom_call.1} parent=59 // pred_check
          %p914 = pneg %p157
        $region62: #{tpu_custom_call.1} parent=59 // pred_check_branch
          %916 = sbr.rel (%p914) target = $region64
        $region63: #{tpu_custom_call.1} parent=59 // pred_region
          %s917 = sand.u32 %s142, 1
          %s918 = scalar_lea.sflag [#allocation4], %s917
          %s919 = sand.u32 %s142, 1
          %s920 = smul.addr %s919, 16
          %s921 = scalar_lea.vmem [#allocation8], %s920
          %922 = dma.done %s918, 256
        $region64: #{tpu_custom_call.1} parent=59 // pred_fallthru
          _
      $region60: #{tpu_custom_call.1} parent=5 // pred_fallthru
        _
    $region6: #{tpu_custom_call.1} parent=1 // loop_footer
      %s22 = sadd.s32 1, %s18
    $region7: #{tpu_custom_call.1} parent=1 // loop_footer_branch
      %17 = sbr.rel target = $region3
    $region8: #{tpu_custom_call.1} parent=1 // loop_exit
      _
    %923 = vsyncpa [#allocation3], 1
    %s924 = scalar_lea.sflag [#allocation3], 1
    %925 = vsyncpa %s924, 1
    %926 = vsyncpa [#allocation6], 1
    %927 = vsyncpa [#allocation4], 1
    %s928 = scalar_lea.sflag [#allocation4], 1
    %929 = vsyncpa %s928, 1

</llo_original>
